<compile_context>
chip_gen: v5e
topology: v5e:2x2
jax: 0.10.0
libtpu: 0.0.40
codegen_flags: <defaults>
</compile_context>

<pallas_src>
import jax
import jax.numpy as jnp
from jax.experimental import pallas as pl
from jax.experimental.pallas import tpu as pltpu


def _round_up(x, m):
    return ((x + m - 1) // m) * m


def _cdiv(a, b):
    return (a + b - 1) // b


def _device_kind():
    try:
        return jax.devices()[0].device_kind.lower()
    except Exception:
        return ""


def _default_num_cores(kind):
    # v4 / v5p (megacore) and v7x expose 2 TensorCores per device; v5e/v6e have 1.
    if any(t in kind for t in ("v7", "7x", "v4", "v5p")):
        return 2
    return 1


def _default_input_buffers(kind):
    # On v7x (3.2 TB/s HBM) a third input buffer hides per-step fixed overhead
    # and DMA issue latency; elsewhere the default double-buffering is enough.
    if any(t in kind for t in ("v7", "7x")):
        return 3
    return 2


def spectral_convergence_loss(x_mag, y_mag, *, num_cores=None, input_buffers=None,
                              vmem_limit_bytes=32 * 1024 * 1024):
    """x_mag, y_mag: (B, frames, freq_bins) magnitudes -> scalar float32 loss."""
    assert x_mag.shape == y_mag.shape, (x_mag.shape, y_mag.shape)
    assert x_mag.dtype == y_mag.dtype, (x_mag.dtype, y_mag.dtype)

    N = x_mag.shape[-1]
    # Metadata-only flatten: (B, frames, freq) -> (B*frames, freq). No HBM copy,
    # no padding pass.
    x2 = x_mag.reshape(-1, N)
    y2 = y_mag.reshape(-1, N)
    R = x2.shape[0]

    kind = _device_kind()
    if num_cores is None:
        num_cores = _default_num_cores(kind)
    if input_buffers is None:
        input_buffers = _default_input_buffers(kind)

    itemsize = jnp.dtype(x_mag.dtype).itemsize
    sub = max(8, 32 // itemsize)            # sublane tile: 8 rows (f32) / 16 (bf16)

    # Don't split across cores unless each core gets at least one sublane tile.
    num_cores = max(1, min(num_cores, R // sub))

    # --- Tile sizing ---------------------------------------------------------
    # Purely HBM-bandwidth bound: target ~2 MiB per input buffer (streaming-add
    # roofline saturates around 512-1024 f32 rows at typical STFT widths) while
    # keeping 2 inputs x input_buffers buffers well inside the VMEM budget.
    bytes_per_row = N * itemsize
    target_tile_bytes = 2 * 1024 * 1024
    input_budget = int(vmem_limit_bytes * 0.85)      # accumulator block is tiny
    max_tile_bytes = min(target_tile_bytes, input_budget // (2 * input_buffers))
    max_rows = max(sub, (max_tile_bytes // bytes_per_row) // sub * sub)

    rows_per_core = _cdiv(R, num_cores)
    chunks = max(1, _cdiv(rows_per_core, max_rows))
    rows = _round_up(_cdiv(rows_per_core, chunks), sub)

    total_blocks = _cdiv(R, rows)            # blocks that actually touch data
    last_block = total_blocks - 1
    coverage = num_cores * chunks * rows
    needs_mask = coverage != R               # last block(s) have garbage rows
    needs_clamp = num_cores * chunks > total_blocks   # some block fully past R

    def in_index_map(c, i):
        b = c * chunks + i
        if needs_clamp:
            # Keep the DMA in-bounds; the in-kernel mask (built from the
            # *nominal* block index) zeroes the duplicated rows out anyway.
            b = jnp.minimum(b, last_block)
        return (b, 0)

    if input_buffers != 2:
        in_spec = pl.BlockSpec((rows, N), in_index_map,
                               pipeline_mode=pl.Buffered(input_buffers))
    else:
        in_spec = pl.BlockSpec((rows, N), in_index_map)

    def kernel(x_ref, y_ref, acc_ref):
        c = pl.program_id(0)   # parallel core axis
        i = pl.program_id(1)   # sequential ("arbitrary") row-chunk axis

        @pl.when(i == 0)
        def _init():
            acc_ref[...] = jnp.zeros_like(acc_ref)

        x = x_ref[...].astype(jnp.float32)
        y = y_ref[...].astype(jnp.float32)
        diff = jnp.abs(y - x)   # |y - x|
        ymag = jnp.abs(y)       # |y|

        if needs_mask:
            # Trailing rows past R contain undefined data -> zero them out.
            row0 = (c * chunks + i) * rows
            row_ids = row0 + jax.lax.broadcasted_iota(jnp.int32, (rows, N), 0)
            valid = row_ids < R
            diff = jnp.where(valid, diff, 0.0)
            ymag = jnp.where(valid, ymag, 0.0)

        # Fold (rows, N) -> (8, N): sublane-block vector adds only (VPU);
        # no cross-lane / XLU work in the steady-state loop.
        diff_p = diff.reshape(rows // 8, 8, N).sum(axis=0)
        ymag_p = ymag.reshape(rows // 8, 8, N).sum(axis=0)
        acc_ref[0, 0:8, :] += diff_p
        acc_ref[0, 8:16, :] += ymag_p

    partials = pl.pallas_call(
        kernel,
        out_shape=jax.ShapeDtypeStruct((num_cores, 16, N), jnp.float32),
        grid_spec=pltpu.PrefetchScalarGridSpec(
            num_scalar_prefetch=0,
            grid=(num_cores, chunks),
            in_specs=[in_spec, in_spec],
            out_specs=pl.BlockSpec((1, 16, N), lambda c, i: (c, 0, 0)),
        ),
        compiler_params=pltpu.CompilerParams(
            dimension_semantics=("parallel", "arbitrary"),
            vmem_limit_bytes=vmem_limit_bytes,
        ),
    )(x2, y2)

    # Tiny epilogue reduce (num_cores*16*N f32) + divide in plain JAX.
    num = jnp.sum(partials[:, 0:8, :])
    den = jnp.sum(partials[:, 8:16, :])
    # NOTE: division by zero when ||y_mag||_1 == 0 matches the torch reference.
    return num / den


def spectral_convergence_loss_ref(x_mag, y_mag):
    """Pure-JAX reference matching torch.norm(y - x, p=1) / torch.norm(y, p=1)."""
    x = x_mag.astype(jnp.float32)
    y = y_mag.astype(jnp.float32)
    return jnp.sum(jnp.abs(y - x)) / jnp.sum(jnp.abs(y))


if __name__ == "__main__":
    key = jax.random.PRNGKey(0)
    kx, ky, kx2, ky2 = jax.random.split(key, 4)

    # (B, #frames, #freq_bins) magnitude spectrograms (non-negative, like |STFT|).
    B, F, N = 2, 16, 64
    x_mag = jnp.abs(jax.random.normal(kx, (B, F, N), dtype=jnp.float32))
    y_mag = jnp.abs(jax.random.normal(ky, (B, F, N), dtype=jnp.float32))

    loss = spectral_convergence_loss(x_mag, y_mag)
    jax.block_until_ready(loss)
    ref = spectral_convergence_loss_ref(x_mag, y_mag)
    assert jnp.allclose(loss, ref, rtol=1e-5, atol=1e-6), (loss, ref)

    # Non-aligned shapes (33 rows, 65 freq bins): exercises the unpadded full-N
    # block path plus in-kernel trailing-row masking.
    B2, F2, N2 = 3, 11, 65
    x2 = jnp.abs(jax.random.normal(kx2, (B2, F2, N2), dtype=jnp.float32))
    y2 = jnp.abs(jax.random.normal(ky2, (B2, F2, N2), dtype=jnp.float32))
    loss2 = spectral_convergence_loss(x2, y2)
    jax.block_until_ready(loss2)
    ref2 = spectral_convergence_loss_ref(x2, y2)
    assert jnp.allclose(loss2, ref2, rtol=1e-5, atol=1e-6), (loss2, ref2)

    # bf16 inputs (halved HBM traffic): 16-row sublane tiles, f32 accumulation.
    x3 = x2.astype(jnp.bfloat16)
    y3 = y2.astype(jnp.bfloat16)
    loss3 = spectral_convergence_loss(x3, y3)
    jax.block_until_ready(loss3)
    ref3 = spectral_convergence_loss_ref(x3, y3)
    assert jnp.allclose(loss3, ref3, rtol=1e-4, atol=1e-5), (loss3, ref3)

    print("KERNEL_OK")
</pallas_src>

<mosaic_0001>
module attributes {stable_mosaic.version = 11 : i64} {
  func.func @kernel(%arg0: i32, %arg1: i32, %arg2: memref<32x64xf32, #tpu.memory_space<vmem>>, %arg3: memref<32x64xf32, #tpu.memory_space<vmem>>, %arg4: memref<1x16x64xf32, #tpu.memory_space<vmem>>) attributes {dimension_semantics = [#tpu.dimension_semantics<parallel>, #tpu.dimension_semantics<arbitrary>], iteration_bounds = array<i64: 1, 1>, scalar_prefetch = 0 : i64, scratch_operands = 0 : i64, tpu.core_type = #tpu.core_type<tc>, window_params = [{transform_indices = @transform_0, window_bounds = array<i64: 32, 64>}, {transform_indices = @transform_1, window_bounds = array<i64: 32, 64>}, {transform_indices = @transform_2, window_bounds = array<i64: 1, 16, 64>}]} {
    %c0_i32 = arith.constant 0 : i32
    %0 = arith.cmpi eq, %arg1, %c0_i32 : i32
    %1 = arith.extui %0 : i1 to i32
    %c0_i32_0 = arith.constant 0 : i32
    %2 = arith.cmpi ne, %1, %c0_i32_0 : i32
    scf.if %2 {
      %cst_16 = arith.constant 0.000000e+00 : f32
      %24 = vector.broadcast %cst_16 : f32 to vector<1x16x64xf32>
      %c0_17 = arith.constant 0 : index
      %c0_18 = arith.constant 0 : index
      %c0_19 = arith.constant 0 : index
      %25 = vector.load %arg4[%c0_17, %c0_18, %c0_19] : memref<1x16x64xf32, #tpu.memory_space<vmem>>, vector<1x16x64xf32>
      tpu.vector_store %arg4[%c0_17, %c0_18, %c0_19], %24 {strides = array<i32>} : memref<1x16x64xf32, #tpu.memory_space<vmem>>, vector<1x16x64xf32>,
    } else {
    }
    %c0 = arith.constant 0 : index
    %c0_1 = arith.constant 0 : index
    %3 = vector.load %arg2[%c0, %c0_1] : memref<32x64xf32, #tpu.memory_space<vmem>>, vector<32x64xf32>
    %c0_2 = arith.constant 0 : index
    %c0_3 = arith.constant 0 : index
    %4 = vector.load %arg3[%c0_2, %c0_3] : memref<32x64xf32, #tpu.memory_space<vmem>>, vector<32x64xf32>
    %5 = arith.subf %4, %3 : vector<32x64xf32>
    %6 = math.absf %5 : vector<32x64xf32>
    %7 = math.absf %4 : vector<32x64xf32>
    %8 = vector.shape_cast %6 : vector<32x64xf32> to vector<4x8x64xf32>
    %cst = arith.constant dense<0.000000e+00> : vector<8x64xf32>
    %9 = vector.multi_reduction <add>, %8, %cst [0] : vector<4x8x64xf32> to vector<8x64xf32>
    %10 = vector.shape_cast %7 : vector<32x64xf32> to vector<4x8x64xf32>
    %cst_4 = arith.constant dense<0.000000e+00> : vector<8x64xf32>
    %11 = vector.multi_reduction <add>, %10, %cst_4 [0] : vector<4x8x64xf32> to vector<8x64xf32>
    %c0_5 = arith.constant 0 : index
    %c0_6 = arith.constant 0 : index
    %c0_7 = arith.constant 0 : index
    %12 = vector.load %arg4[%c0_5, %c0_6, %c0_7] : memref<1x16x64xf32, #tpu.memory_space<vmem>>, vector<1x8x64xf32>
    %13 = vector.shape_cast %12 : vector<1x8x64xf32> to vector<8x64xf32>
    %14 = arith.addf %13, %9 : vector<8x64xf32>
    %c0_8 = arith.constant 0 : index
    %c0_9 = arith.constant 0 : index
    %c0_10 = arith.constant 0 : index
    %15 = vector.load %arg4[%c0_8, %c0_9, %c0_10] : memref<1x16x64xf32, #tpu.memory_space<vmem>>, vector<1x8x64xf32>
    %16 = vector.shape_cast %15 : vector<1x8x64xf32> to vector<8x64xf32>
    %17 = vector.shape_cast %14 : vector<8x64xf32> to vector<1x8x64xf32>
    tpu.vector_store %arg4[%c0_8, %c0_9, %c0_10], %17 {strides = array<i32>} : memref<1x16x64xf32, #tpu.memory_space<vmem>>, vector<1x8x64xf32>,
    %c0_11 = arith.constant 0 : index
    %c8 = arith.constant 8 : index
    %c0_12 = arith.constant 0 : index
    %18 = vector.load %arg4[%c0_11, %c8, %c0_12] : memref<1x16x64xf32, #tpu.memory_space<vmem>>, vector<1x8x64xf32>
    %19 = vector.shape_cast %18 : vector<1x8x64xf32> to vector<8x64xf32>
    %20 = arith.addf %19, %11 : vector<8x64xf32>
    %c0_13 = arith.constant 0 : index
    %c8_14 = arith.constant 8 : index
    %c0_15 = arith.constant 0 : index
    %21 = vector.load %arg4[%c0_13, %c8_14, %c0_15] : memref<1x16x64xf32, #tpu.memory_space<vmem>>, vector<1x8x64xf32>
    %22 = vector.shape_cast %21 : vector<1x8x64xf32> to vector<8x64xf32>
    %23 = vector.shape_cast %20 : vector<8x64xf32> to vector<1x8x64xf32>
    tpu.vector_store %arg4[%c0_13, %c8_14, %c0_15], %23 {strides = array<i32>} : memref<1x16x64xf32, #tpu.memory_space<vmem>>, vector<1x8x64xf32>,
    return
  }
  func.func @transform_0(%arg0: i32, %arg1: i32) -> (i32, i32) {
    %c1_i32 = arith.constant 1 : i32
    %0 = arith.muli %arg0, %c1_i32 : i32
    %1 = arith.addi %0, %arg1 : i32
    %c0_i32 = arith.constant 0 : i32
    %c0_i32_0 = arith.constant 0 : i32
    return %1, %c0_i32 : i32, i32
  }
  func.func @transform_1(%arg0: i32, %arg1: i32) -> (i32, i32) {
    %c1_i32 = arith.constant 1 : i32
    %0 = arith.muli %arg0, %c1_i32 : i32
    %1 = arith.addi %0, %arg1 : i32
    %c0_i32 = arith.constant 0 : i32
    %c0_i32_0 = arith.constant 0 : i32
    return %1, %c0_i32 : i32, i32
  }
  func.func @transform_2(%arg0: i32, %arg1: i32) -> (i32, i32, i32) {
    %c0_i32 = arith.constant 0 : i32
    %c0_i32_0 = arith.constant 0 : i32
    %c0_i32_1 = arith.constant 0 : i32
    return %arg0, %c0_i32, %c0_i32_0 : i32, i32, i32
  }
}

</mosaic_0001>

<llo_original>
// kernel: tpu_custom_call.1
$region0: #{tpu_custom_call.1}
  #allocation0 [shape = 'u32[]', space=smem, size = 0x4, offset = 0x4, fixed_abs, tag = 'smem constant byte address 0x4 - core index']
  #allocation1 [shape = 'u32[72,128]{1,0:T(1,128)}', space=vmem, size = 0x9000, scoped, tag = 'internal scratch']
  %s0 = inlined_call_operand.hbm [shape: f32[32,64], index: 0, kind: input, shape index: {}]
  %s1 = inlined_call_operand.hbm [shape: f32[32,64], index: 1, kind: input, shape index: {}]
  %s2 = inlined_call_operand.hbm [shape: f32[1,16,64], index: 2, kind: output, shape index: {}]
  %s3 = sld [smem:[#allocation0]]
  $region30: #{tpu_custom_call.1} parent=0
    _
  %s5 = ssub.s32 1, %s3
  %s6 = scalar_select 0, %s5, %s3
  $region1: #{tpu_custom_call.1} parent=0
    #allocation2 [shape = 'u8[16384]{0}', space=vmem, size = 0x4000, scoped, tag = 'input window, operand 0, single buffered']
    #allocation3 [shape = 's32[1]{0}', space=sflag, size = 0x4, scoped, tag = 'scoped memory for tpu_custom_call.1']
    #allocation4 [shape = 's32[1]{0}', space=sflag, size = 0x4, scoped, tag = 'scoped memory for tpu_custom_call.1']
    #allocation5 [shape = 'u8[16384]{0}', space=vmem, size = 0x4000, scoped, tag = 'input window, operand 1, single buffered']
    #allocation6 [shape = 's32[1]{0}', space=sflag, size = 0x4, scoped, tag = 'scoped memory for tpu_custom_call.1']
    #allocation7 [shape = 'u8[8192]{0}', space=vmem, size = 0x2000, scoped, tag = 'output window, operand 0, single buffered']
    %7 = vsyncpa [#allocation3], 0
    %8 = vsyncpa [#allocation6], 0
    %9 = vsyncpa [#allocation4], 0
    // Predicated region
    $region2: #{tpu_custom_call.1} parent=1 // pred_check
      _
    $region3: #{tpu_custom_call.1} parent=1 // pred_check_branch
      %11 = sbr.rel (0) target = $region5
    $region4: #{tpu_custom_call.1} parent=1 // pred_region
      %s12 = sadd.s32 0, 0
      %s13 = smul.u32 4, %s12
      %15 = vsyncadd [#allocation3], 0
      %s16 = smul.addr %s13, 8
      %s17 = scalar_lea.hbm %s0, %s16
      %s18 = sshll.u32 %s17, 4
      %s19 = int_to_ptr.hbm [resolvable:$true] %s18
      %s20 = sshll.u32 [#allocation2], 4
      %s21 = int_to_ptr.vmem [resolvable:$true] %s20
      %26 = dma.hbm_to_vmem [thread:$0]  %s19, 512, %s21, [#allocation3], 128, 128, 8
    $region5: #{tpu_custom_call.1} parent=1 // pred_fallthru
      _
    // Predicated region
    $region6: #{tpu_custom_call.1} parent=1 // pred_check
      _
    $region7: #{tpu_custom_call.1} parent=1 // pred_check_branch
      %28 = sbr.rel (0) target = $region9
    $region8: #{tpu_custom_call.1} parent=1 // pred_region
      %s29 = sadd.s32 0, 0
      %s30 = smul.u32 4, %s29
      %32 = vsyncadd [#allocation6], 0
      %s33 = smul.addr %s30, 8
      %s34 = scalar_lea.hbm %s1, %s33
      %s35 = sshll.u32 %s34, 4
      %s36 = int_to_ptr.hbm [resolvable:$true] %s35
      %s37 = sshll.u32 [#allocation5], 4
      %s38 = int_to_ptr.vmem [resolvable:$true] %s37
      %43 = dma.hbm_to_vmem [thread:$0]  %s36, 512, %s38, [#allocation6], 128, 128, 8
    $region9: #{tpu_custom_call.1} parent=1 // pred_fallthru
      _
    // Predicated region
    $region10: #{tpu_custom_call.1} parent=1 // pred_check
      _
    $region11: #{tpu_custom_call.1} parent=1 // pred_check_branch
      %45 = sbr.rel (0) target = $region13
    $region12: #{tpu_custom_call.1} parent=1 // pred_region
      %47 = dma.done [#allocation3], 512
    $region13: #{tpu_custom_call.1} parent=1 // pred_fallthru
      _
    // Predicated region
    $region14: #{tpu_custom_call.1} parent=1 // pred_check
      _
    $region15: #{tpu_custom_call.1} parent=1 // pred_check_branch
      %49 = sbr.rel (0) target = $region17
    $region16: #{tpu_custom_call.1} parent=1 // pred_region
      %51 = dma.done [#allocation6], 512
    $region17: #{tpu_custom_call.1} parent=1 // pred_fallthru
      _
    %s52 = sadd.s32 0, 0
    %s53 = smul.u32 4, %s52
    %s54 = sadd.s32 0, 0
    %s55 = smul.u32 4, %s54
    %p56 = scmp.eq.s32.totalorder 0, 0
    // Predicated region
    $region18: #{tpu_custom_call.1} parent=1 // pred_check
      %p57 = pneg %p56
    $region19: #{tpu_custom_call.1} parent=1 // pred_check_branch
      %59 = sbr.rel (%p57) target = $region21
    $region20: #{tpu_custom_call.1} parent=1 // pred_region
      %vm60 = vcmask 523264
      %61 = vst.msk [vmem:[#allocation7] sm:$0xff] %vm60, 0.0
      %62 = vst.msk [vmem:[#allocation7 + $0x8] sm:$0xff] %vm60, 0.0
    $region21: #{tpu_custom_call.1} parent=1 // pred_fallthru
      _
    %v63 = vld [vmem:[#allocation2] sm:$0xff]
    %v64 = vld [vmem:[#allocation2 + $0x8] sm:$0xff]
    %v65 = vld [vmem:[#allocation2 + $0x10] sm:$0xff]
    %v66 = vld [vmem:[#allocation2 + $0x18] sm:$0xff]
    %v67 = vld [vmem:[#allocation5] sm:$0xff]
    %v68 = vld [vmem:[#allocation5 + $0x8] sm:$0xff]
    %v69 = vld [vmem:[#allocation5 + $0x10] sm:$0xff]
    %v70 = vld [vmem:[#allocation5 + $0x18] sm:$0xff]
    %v71 = vsub.f32 %v67, %v63
    %v72 = vsub.f32 %v68, %v64
    %v73 = vsub.f32 %v69, %v65
    %v74 = vsub.f32 %v70, %v66
    %v75 = vand.u32 2147483647, %v71
    %v76 = vand.u32 2147483647, %v72
    %v77 = vand.u32 2147483647, %v73
    %v78 = vand.u32 2147483647, %v74
    %v79 = vand.u32 2147483647, %v67
    %v80 = vand.u32 2147483647, %v68
    %v81 = vand.u32 2147483647, %v69
    %v82 = vand.u32 2147483647, %v70
    %vm83 = vcmask 523264
    %v84 = vsel %vm83, %v75, 0.0
    %v85 = vsel %vm83, %v76, 0.0
    %v86 = vadd.f32 %v84, %v85
    %v87 = vsel %vm83, %v77, 0.0
    %v88 = vadd.f32 %v86, %v87
    %v89 = vsel %vm83, %v78, 0.0
    %v90 = vadd.f32 %v88, %v89
    %v91 = vsel %vm83, %v79, 0.0
    %v92 = vsel %vm83, %v80, 0.0
    %v93 = vadd.f32 %v91, %v92
    %v94 = vsel %vm83, %v81, 0.0
    %v95 = vadd.f32 %v93, %v94
    %v96 = vsel %vm83, %v82, 0.0
    %v97 = vadd.f32 %v95, %v96
    %v98 = vld [vmem:[#allocation7] sm:$0xff]
    %v99 = vadd.f32 %v98, %v90
    %100 = vst.msk [vmem:[#allocation7] sm:$0xff] %vm83, %v99
    %v101 = vld [vmem:[#allocation7 + $0x8] sm:$0xff]
    %v102 = vadd.f32 %v101, %v97
    %103 = vst.msk [vmem:[#allocation7 + $0x8] sm:$0xff] %vm83, %v102
    // Predicated region
    $region22: #{tpu_custom_call.1} parent=1 // pred_check
      _
    $region23: #{tpu_custom_call.1} parent=1 // pred_check_branch
      %105 = sbr.rel (0) target = $region25
    $region24: #{tpu_custom_call.1} parent=1 // pred_region
      %107 = vsyncadd [#allocation4], 0
      %s108 = sshll.u32 [#allocation7], 4
      %s109 = int_to_ptr.vmem [resolvable:$true] %s108
      %s110 = sshll.u32 %s2, 4
      %s111 = int_to_ptr.hbm [resolvable:$true] %s110
      %116 = dma.vmem_to_hbm [thread:$0]  %s109, 256, %s111, [#allocation4], 128, 128, 8
    $region25: #{tpu_custom_call.1} parent=1 // pred_fallthru
      _
    // Predicated region
    $region26: #{tpu_custom_call.1} parent=1 // pred_check
      _
    $region27: #{tpu_custom_call.1} parent=1 // pred_check_branch
      %118 = sbr.rel (0) target = $region29
    $region28: #{tpu_custom_call.1} parent=1 // pred_region
      %120 = dma.done [#allocation4], 256
    $region29: #{tpu_custom_call.1} parent=1 // pred_fallthru
      _
    %121 = vsyncpa [#allocation3], 1
    %122 = vsyncpa [#allocation6], 1
    %123 = vsyncpa [#allocation4], 1

</llo_original>
